<compile_context>
chip_gen: v7x
topology: tpu7x:2x2x1
jax: 0.10.0
libtpu: 0.0.40
codegen_flags: <defaults>
</compile_context>

<pallas_src>
import math

import jax
import jax.numpy as jnp
from jax.experimental import pallas as pl
from jax.experimental.pallas import tpu as pltpu


# ---------------------------------------------------------------------------
# Kernel
# ---------------------------------------------------------------------------
def bert_embed_kernel(x_ref, doy_ref, exp_ref, wx_ref, wpe_ref, b_ref, out_ref):
    """One grid step: TMP packed rows -> lane-dense [obs | pos] output rows.

    x_ref:   (TMP, P*F)   f32  P original rows packed lane-wise per stored row
    doy_ref: (TMP, P)     f32  clamped day-of-year + q*L lane-block offset (q = packed slot)
    exp_ref: (P, P*L)     f32  block-broadcast matrix: exp[q, j] = 1 iff j // L == q
    wx_ref:  (P*F, P*OW)  f32  block-diagonal Linear weight (obs columns of each block)
    wpe_ref: (P*L, P*OW)  f32  block-diagonal positional table (pos columns of each block)
    b_ref:   (1, P*OW)    f32  Linear bias in obs lanes, zeros in pos lanes
    out_ref: (TMP, P*OW)  f32  lane-dense concatenated [obs | pos] per packed row
    """
    # Lane-block broadcast of the offset doy indices via a tiny MXU matmul:
    #   t[r, j] = doy_off[r, j // L]
    # Single pass (replaces the old P-deep jnp.where chain -> off the VALU roofline).
    t = jnp.dot(doy_ref[...], exp_ref[...], preferred_element_type=jnp.float32)
    col = jax.lax.broadcasted_iota(jnp.int32, t.shape, 1).astype(jnp.float32)
    onehot = (col == t).astype(jnp.float32)  # exact 0/1 in f32

    # obs = x @ W and pos = onehot @ pe; block-diagonal weights make both land already
    # concatenated in the lane-dense output layout -> no in-kernel concat / relayout.
    y = jnp.dot(x_ref[...], wx_ref[...], preferred_element_type=jnp.float32)
    y = y + jnp.dot(onehot, wpe_ref[...], preferred_element_type=jnp.float32)
    out_ref[...] = y + b_ref[...]


# ---------------------------------------------------------------------------
# Parameter preparation (done once, hoisted out of the per-call path)
# ---------------------------------------------------------------------------
def make_pe(d_model: int, max_len: int) -> jnp.ndarray:
    """Identical construction to PositionalEncoding.__init__ (row 0 is zeros)."""
    pe = jnp.zeros((max_len + 1, d_model), jnp.float32)
    position = jnp.arange(0, max_len, dtype=jnp.float32)[:, None]
    div_term = jnp.exp(
        jnp.arange(0, d_model, 2, dtype=jnp.float32) * -(math.log(10000.0) / d_model)
    )
    pe = pe.at[1:, 0::2].set(jnp.sin(position * div_term))
    pe = pe.at[1:, 1::2].set(jnp.cos(position * div_term))
    return pe


def _round_up(n: int, m: int) -> int:
    return ((n + m - 1) // m) * m


# Packing / tiling budgets (see header comments).
_MAX_FUSED_FLOPS_PER_ROW = 72 * 1024   # keeps v5e near its HBM/MXU crossover
_MAX_FUSED_WEIGHT_BYTES = 4 << 20      # resident block-diag params stay small in VMEM
_VMEM_BUDGET_BYTES = 44 << 20          # per-step working-set target (fits v7x 64 MiB)
_VMEM_LIMIT_BYTES = 48 << 20           # explicit scoped-VMEM limit (v5e default is only 16 MiB)


def _choose_packing(F: int, L: int, out_w: int) -> int:
    """Smallest lane-dense packing, bumped toward 256-wide output / >=32-lane x rows."""
    P = 1
    while (P * out_w) % 128 != 0:       # lcm-based: handles non-power-of-two embedding dims
        P += 1

    def cost_ok(p):
        flops_row = 2 * p * (F + L + p) * out_w          # block-diag matmuls, per original row
        wbytes = (p * F + p * L + p + 1) * (p * out_w) * 4
        return flops_row <= _MAX_FUSED_FLOPS_PER_ROW and wbytes <= _MAX_FUSED_WEIGHT_BYTES

    while ((P * out_w) % 256 != 0 or P * F < 32) and cost_ok(2 * P):
        P *= 2
    return P


def prepare_bert_embedding(W, b, pe):
    """Build fused block-diagonal parameters once (module-init time), not per call."""
    F, D = W.shape
    L = pe.shape[0]
    out_w = 2 * D
    P = _choose_packing(F, L, out_w)

    eye = jnp.eye(P, dtype=jnp.float32)
    W_f32 = W.astype(jnp.float32)
    pe_f32 = pe.astype(jnp.float32)
    b_f32 = b.reshape(1, D).astype(jnp.float32)

    W_x = jnp.kron(eye, jnp.concatenate([W_f32, jnp.zeros((F, D), jnp.float32)], axis=1))
    W_pe = jnp.kron(eye, jnp.concatenate([jnp.zeros((L, D), jnp.float32), pe_f32], axis=1))
    expand = jnp.kron(eye, jnp.ones((1, L), jnp.float32))
    b_big = jnp.tile(jnp.concatenate([b_f32, jnp.zeros((1, D), jnp.float32)], axis=1), (1, P))

    return dict(P=P, F=F, D=D, L=L, out_w=out_w,
                W_x=W_x, W_pe=W_pe, expand=expand, b_big=b_big)


# ---------------------------------------------------------------------------
# Forward wrapper
# ---------------------------------------------------------------------------
def bert_embedding(params, x, doy, *, tm=8192):
    """x: [B,S,F] float, doy: [B,S] int -> [B,S,2D] float32."""
    P, F, D, L, out_w = (params[k] for k in ("P", "F", "D", "L", "out_w"))
    B, S = x.shape[0], x.shape[1]
    N = B * S

    # ---- pack P original rows side-by-side (lane-dense output, block-diag matmuls) ----
    N_pad = _round_up(N, P)                        # only packing alignment; no tile padding
    x2 = x.reshape(N, F)
    if x2.dtype != jnp.float32:
        x2 = x2.astype(jnp.float32)
    d2 = jnp.clip(doy.reshape(N).astype(jnp.int32), 0, L - 1)
    if N_pad != N:                                 # rare small pad (only when N % P != 0)
        x2 = jnp.pad(x2, ((0, N_pad - N), (0, 0)))
        d2 = jnp.pad(d2, (0, N_pad - N))
    n_pack = N_pad // P
    xp = x2.reshape(n_pack, P * F)
    # Fold the +q*L lane-block offset into doy here (cheap fused add on a tiny array).
    dp = d2.reshape(n_pack, P).astype(jnp.float32) + jnp.arange(P, dtype=jnp.float32) * L

    # ---- tile size: big (amortize ~0.35us/step), capped by a VMEM working-set budget ----
    lane = lambda n: _round_up(n, 128)

    def est_vmem(rows):
        io = 2 * rows * (lane(P * F) + lane(P) + lane(P * out_w)) * 4       # double-buffered streams
        tmp = rows * (3 * lane(P * L) + 2 * lane(P * out_w)) * 4            # iota / t / one-hot / matmul temps
        wts = 4 * ((P * F + P * L + 8) * lane(P * out_w) + P * lane(P * L)) # resident fused params
        return io + tmp + wts

    tm_rows = _round_up(pl.cdiv(max(tm, 8 * P), P), 8)
    while tm_rows > 8 and est_vmem(tm_rows) > _VMEM_BUDGET_BYTES:
        tm_rows = max(8, _round_up(tm_rows // 2, 8))

    if tm_rows >= n_pack:
        tm_rows = n_pack                    # single full-array block (any row count is legal)
        grid_steps = 1
    else:
        grid_steps = pl.cdiv(n_pack, tm_rows)        # partial last block is masked by Pallas
        if grid_steps % 2 == 1:                      # even step count -> balanced 2-TC (v7x)
            alt_rows = max(8, _round_up(pl.cdiv(n_pack, grid_steps + 1), 8))
            alt_steps = pl.cdiv(n_pack, alt_rows)
            if alt_steps % 2 == 0:
                tm_rows, grid_steps = alt_rows, alt_steps

    # Advisory cost: only non-zero-block (useful) flops; params are loaded once.
    flops = int(2 * N_pad * D * (F + L))
    bytes_accessed = int(
        N_pad * (4 * F + 4 + 4 * out_w)
        + 4 * (params["W_x"].size + params["W_pe"].size
               + params["expand"].size + params["b_big"].size)
    )
    cost = pl.CostEstimate(flops=flops, transcendentals=0, bytes_accessed=bytes_accessed)

    out = pl.pallas_call(
        bert_embed_kernel,
        out_shape=jax.ShapeDtypeStruct((n_pack, P * out_w), jnp.float32),
        grid=(grid_steps,),
        in_specs=[
            pl.BlockSpec((tm_rows, P * F), lambda i: (i, 0)),       # packed x rows      (streamed)
            pl.BlockSpec((tm_rows, P), lambda i: (i, 0)),           # packed doy rows    (streamed)
            pl.BlockSpec((P, P * L), lambda i: (0, 0)),             # lane-block broadcast (resident)
            pl.BlockSpec((P * F, P * out_w), lambda i: (0, 0)),     # fused Linear W       (resident)
            pl.BlockSpec((P * L, P * out_w), lambda i: (0, 0)),     # fused pe table       (resident)
            pl.BlockSpec((1, P * out_w), lambda i: (0, 0)),         # fused bias           (resident)
        ],
        out_specs=pl.BlockSpec((tm_rows, P * out_w), lambda i: (i, 0)),
        compiler_params=pltpu.CompilerParams(
            dimension_semantics=("parallel",),
            vmem_limit_bytes=_VMEM_LIMIT_BYTES),
        cost_estimate=cost,
    )(xp, dp, params["expand"], params["W_x"], params["W_pe"], params["b_big"])

    out = out.reshape(N_pad, out_w)         # free bitcast (row-major unpack of the P lanes)
    if N_pad != N:
        out = out[:N]                       # only when N is not a multiple of P
    return out.reshape(B, S, out_w)


def bert_embedding_ref(x, doy, W, b, pe):
    obs = jnp.einsum("bsf,fd->bsd", x, W) + b[0]
    pos = pe[doy]
    return jnp.concatenate([obs, pos], axis=-1)


if __name__ == "__main__":
    # Small shapes consistent with the module's forward.
    B, S, F, D, MAX_LEN = 2, 8, 4, 32, 16

    key = jax.random.PRNGKey(0)
    k_w, k_b, k_x, k_d = jax.random.split(key, 4)

    # Deterministic synthetic parameters (nn.Linear(num_features, embedding_dim)).
    W = jax.random.normal(k_w, (F, D), jnp.float32) * 0.1
    b = jax.random.normal(k_b, (1, D), jnp.float32) * 0.1
    pe = make_pe(D, MAX_LEN)                       # (MAX_LEN + 1, D)
    params = prepare_bert_embedding(W, b, pe)      # fused block-diag params built once

    # Base case.
    x = jax.random.normal(k_x, (B, S, F), jnp.float32)
    doy = jax.random.randint(k_d, (B, S), 1, MAX_LEN + 1, dtype=jnp.int32)
    out = jax.block_until_ready(bert_embedding(params, x, doy))
    ref = bert_embedding_ref(x, doy, W, b, pe)
    assert out.shape == (B, S, 2 * D)
    assert jnp.allclose(out, ref, atol=1e-5, rtol=1e-5), "mismatch vs reference"

    # Ragged row count: B*S not a multiple of the packing factor -> small pad + slice path.
    B2, S2 = 3, 7
    k_x2, k_d2 = jax.random.split(k_d)
    x_r = jax.random.normal(k_x2, (B2, S2, F), jnp.float32)
    doy_r = jax.random.randint(k_d2, (B2, S2), 1, MAX_LEN + 1, dtype=jnp.int32)
    out_r = jax.block_until_ready(bert_embedding(params, x_r, doy_r))
    ref_r = bert_embedding_ref(x_r, doy_r, W, b, pe)
    assert out_r.shape == (B2, S2, 2 * D)
    assert jnp.allclose(out_r, ref_r, atol=1e-5, rtol=1e-5), "mismatch vs reference (ragged)"

    # Multi-step grid with a masked partial last block (small tile forced via tm=).
    B3, S3 = 4, 50
    k_x3, k_d3 = jax.random.split(k_x2)
    x_m = jax.random.normal(k_x3, (B3, S3, F), jnp.float32)
    doy_m = jax.random.randint(k_d3, (B3, S3), 1, MAX_LEN + 1, dtype=jnp.int32)
    out_m = jax.block_until_ready(bert_embedding(params, x_m, doy_m, tm=64))
    ref_m = bert_embedding_ref(x_m, doy_m, W, b, pe)
    assert out_m.shape == (B3, S3, 2 * D)
    assert jnp.allclose(out_m, ref_m, atol=1e-5, rtol=1e-5), "mismatch vs reference (multi-step)"

    # TODO(synk): nn.Dropout(p=0.1) is stochastic in train mode; implemented as eval-mode identity.
    print("KERNEL_OK")
</pallas_src>

<mosaic_0001>
module attributes {stable_mosaic.version = 11 : i64} {
  func.func @bert_embed_kernel(%arg0: i32, %arg1: memref<2x32xf32, #tpu.memory_space<vmem>>, %arg2: memref<2x8xf32, #tpu.memory_space<vmem>>, %arg3: memref<8x136xf32, #tpu.memory_space<vmem>>, %arg4: memref<32x512xf32, #tpu.memory_space<vmem>>, %arg5: memref<136x512xf32, #tpu.memory_space<vmem>>, %arg6: memref<1x512xf32, #tpu.memory_space<vmem>>, %arg7: memref<2x512xf32, #tpu.memory_space<vmem>>) attributes {dimension_semantics = [#tpu.dimension_semantics<parallel>], iteration_bounds = array<i64: 1>, scalar_prefetch = 0 : i64, scratch_operands = 0 : i64, tpu.core_type = #tpu.core_type<tc>, window_params = [{transform_indices = @transform_0, window_bounds = array<i64: 2, 32>}, {transform_indices = @transform_1, window_bounds = array<i64: 2, 8>}, {pipeline_mode = #tpu.pipeline_mode<synchronous>, transform_indices = @transform_2, window_bounds = array<i64: 8, 136>}, {pipeline_mode = #tpu.pipeline_mode<synchronous>, transform_indices = @transform_3, window_bounds = array<i64: 32, 512>}, {pipeline_mode = #tpu.pipeline_mode<synchronous>, transform_indices = @transform_4, window_bounds = array<i64: 136, 512>}, {pipeline_mode = #tpu.pipeline_mode<synchronous>, transform_indices = @transform_5, window_bounds = array<i64: 1, 512>}, {transform_indices = @transform_6, window_bounds = array<i64: 2, 512>}]} {
    %c0 = arith.constant 0 : index
    %c0_0 = arith.constant 0 : index
    %0 = vector.load %arg2[%c0, %c0_0] : memref<2x8xf32, #tpu.memory_space<vmem>>, vector<2x8xf32>
    %c0_1 = arith.constant 0 : index
    %c0_2 = arith.constant 0 : index
    %1 = vector.load %arg3[%c0_1, %c0_2] : memref<8x136xf32, #tpu.memory_space<vmem>>, vector<8x136xf32>
    %cst = arith.constant dense<0.000000e+00> : vector<2x136xf32>
    %2 = tpu.matmul %0, %1, %cst {dimension_numbers = #tpu.dot_dimension_numbers<[1], [0], [0], [1], [0, 0, 1, 1], [], []>} : vector<2x8xf32>, vector<8x136xf32>, vector<2x136xf32> -> vector<2x136xf32>
    %3 = tpu.iota {dimensions = array<i32: 1>} : vector<2x136xi32>
    %4 = arith.sitofp %3 : vector<2x136xi32> to vector<2x136xf32>
    %5 = arith.cmpf oeq, %4, %2 : vector<2x136xf32>
    %6 = arith.extui %5 : vector<2x136xi1> to vector<2x136xi32>
    %7 = arith.sitofp %6 : vector<2x136xi32> to vector<2x136xf32>
    %c0_3 = arith.constant 0 : index
    %c0_4 = arith.constant 0 : index
    %8 = vector.load %arg1[%c0_3, %c0_4] : memref<2x32xf32, #tpu.memory_space<vmem>>, vector<2x32xf32>
    %c0_5 = arith.constant 0 : index
    %c0_6 = arith.constant 0 : index
    %9 = vector.load %arg4[%c0_5, %c0_6] : memref<32x512xf32, #tpu.memory_space<vmem>>, vector<32x512xf32>
    %cst_7 = arith.constant dense<0.000000e+00> : vector<2x512xf32>
    %10 = tpu.matmul %8, %9, %cst_7 {dimension_numbers = #tpu.dot_dimension_numbers<[1], [0], [0], [1], [0, 0, 1, 1], [], []>} : vector<2x32xf32>, vector<32x512xf32>, vector<2x512xf32> -> vector<2x512xf32>
    %c0_8 = arith.constant 0 : index
    %c0_9 = arith.constant 0 : index
    %11 = vector.load %arg5[%c0_8, %c0_9] : memref<136x512xf32, #tpu.memory_space<vmem>>, vector<136x512xf32>
    %cst_10 = arith.constant dense<0.000000e+00> : vector<2x512xf32>
    %12 = tpu.matmul %7, %11, %cst_10 {dimension_numbers = #tpu.dot_dimension_numbers<[1], [0], [0], [1], [0, 0, 1, 1], [], []>} : vector<2x136xf32>, vector<136x512xf32>, vector<2x512xf32> -> vector<2x512xf32>
    %13 = arith.addf %10, %12 : vector<2x512xf32>
    %c0_11 = arith.constant 0 : index
    %c0_12 = arith.constant 0 : index
    %14 = vector.load %arg6[%c0_11, %c0_12] : memref<1x512xf32, #tpu.memory_space<vmem>>, vector<1x512xf32>
    %15 = vector.broadcast %14 : vector<1x512xf32> to vector<2x512xf32>
    %16 = arith.addf %13, %15 : vector<2x512xf32>
    %c0_13 = arith.constant 0 : index
    %c0_14 = arith.constant 0 : index
    %17 = vector.load %arg7[%c0_13, %c0_14] : memref<2x512xf32, #tpu.memory_space<vmem>>, vector<2x512xf32>
    tpu.vector_store %arg7[%c0_13, %c0_14], %16 {strides = array<i32>} : memref<2x512xf32, #tpu.memory_space<vmem>>, vector<2x512xf32>,
    return
  }
  func.func @transform_0(%arg0: i32) -> (i32, i32) {
    %c0_i32 = arith.constant 0 : i32
    %c0_i32_0 = arith.constant 0 : i32
    return %arg0, %c0_i32 : i32, i32
  }
  func.func @transform_1(%arg0: i32) -> (i32, i32) {
    %c0_i32 = arith.constant 0 : i32
    %c0_i32_0 = arith.constant 0 : i32
    return %arg0, %c0_i32 : i32, i32
  }
  func.func @transform_2(%arg0: i32) -> (i32, i32) {
    %c0_i32 = arith.constant 0 : i32
    %c0_i32_0 = arith.constant 0 : i32
    %c0_i32_1 = arith.constant 0 : i32
    return %c0_i32, %c0_i32_0 : i32, i32
  }
  func.func @transform_3(%arg0: i32) -> (i32, i32) {
    %c0_i32 = arith.constant 0 : i32
    %c0_i32_0 = arith.constant 0 : i32
    %c0_i32_1 = arith.constant 0 : i32
    return %c0_i32, %c0_i32_0 : i32, i32
  }
  func.func @transform_4(%arg0: i32) -> (i32, i32) {
    %c0_i32 = arith.constant 0 : i32
    %c0_i32_0 = arith.constant 0 : i32
    %c0_i32_1 = arith.constant 0 : i32
    return %c0_i32, %c0_i32_0 : i32, i32
  }
  func.func @transform_5(%arg0: i32) -> (i32, i32) {
    %c0_i32 = arith.constant 0 : i32
    %c0_i32_0 = arith.constant 0 : i32
    %c0_i32_1 = arith.constant 0 : i32
    return %c0_i32, %c0_i32_0 : i32, i32
  }
  func.func @transform_6(%arg0: i32) -> (i32, i32) {
    %c0_i32 = arith.constant 0 : i32
    %c0_i32_0 = arith.constant 0 : i32
    return %arg0, %c0_i32 : i32, i32
  }
}

</mosaic_0001>

<llo_original>
// kernel: tpu_custom_call.1
$region0: #{tpu_custom_call.1}
  #allocation0 [shape = 'u32[]', space=smem, size = 0x4, offset = 0x4, fixed_abs, tag = 'smem constant byte address 0x4 - core index']
  #allocation1 [shape = 'u32[144,128]{1,0:T(1,128)}', space=vmem, size = 0x12000, scoped, tag = 'internal scratch']
  %s0 = inlined_call_operand.hbm [shape: f32[2,32], index: 0, kind: input, shape index: {}]
  %s1 = inlined_call_operand.vmem [shape: f32[2,8], index: 1, kind: input, shape index: {}]
  %s2 = inlined_call_operand.hbm [shape: f32[8,136], index: 2, kind: input, shape index: {}]
  %s3 = inlined_call_operand.hbm [shape: f32[32,512], index: 3, kind: input, shape index: {}]
  %s4 = inlined_call_operand.hbm [shape: f32[136,512], index: 4, kind: input, shape index: {}]
  %s5 = inlined_call_operand.vmem [shape: f32[1,512], index: 5, kind: input, shape index: {}]
  %s6 = inlined_call_operand.hbm [shape: f32[2,512], index: 6, kind: output, shape index: {}]
  %s7 = sld [smem:[#allocation0]]
  $region50: #{tpu_custom_call.1} parent=0
    _
  %s9 = ssub.s32 1, %s7
  %s10 = scalar_select 0, %s9, %s7
  $region1: #{tpu_custom_call.1} parent=0
    #allocation2 [shape = 'u8[1024]{0}', space=vmem, size = 0x400, scoped, tag = 'input window, operand 0, single buffered']
    #allocation3 [shape = 's32[1]{0}', space=sflag, size = 0x4, scoped, tag = 'scoped memory for tpu_custom_call.1']
    #allocation4 [shape = 's32[1]{0}', space=sflag, size = 0x4, scoped, tag = 'scoped memory for tpu_custom_call.1']
    #allocation5 [shape = 'u8[8192]{0}', space=vmem, size = 0x2000, scoped, tag = 'input window, operand 2, single buffered']
    #allocation6 [shape = 's32[1]{0}', space=sflag, size = 0x4, scoped, tag = 'scoped memory for tpu_custom_call.1']
    #allocation7 [shape = 'u8[65536]{0}', space=vmem, size = 0x10000, scoped, tag = 'input window, operand 3, single buffered']
    #allocation8 [shape = 'u8[278528]{0}', space=vmem, size = 0x44000, scoped, tag = 'input window, operand 4, single buffered']
    #allocation9 [shape = 's32[1]{0}', space=sflag, size = 0x4, scoped, tag = 'scoped memory for tpu_custom_call.1']
    #allocation10 [shape = 'u8[4096]{0}', space=vmem, size = 0x1000, scoped, tag = 'output window, operand 0, single buffered']
    %11 = vsyncpa [#allocation3], 0
    %12 = vsyncpa [#allocation6], 0
    %13 = vsyncpa [#allocation9], 0
    %14 = vsyncpa [#allocation4], 0
    // Predicated region
    $region2: #{tpu_custom_call.1} parent=1 // pred_check
      _
    $region3: #{tpu_custom_call.1} parent=1 // pred_check_branch
      %16 = sbr.rel (0) target = $region5
    $region4: #{tpu_custom_call.1} parent=1 // pred_region
      %s18 = ssub.s32 32, 32
      %19 = vsyncadd [#allocation3], %s18
      %s21 = sshll.u32 [#allocation2], 4
      %s22 = int_to_ptr.vmem [resolvable:$true] %s21
      %24 = dma.hbm_to_vmem [thread:$0]  %s0, 32, %s22, [#allocation3]
    $region5: #{tpu_custom_call.1} parent=1 // pred_fallthru
      _
    // Predicated region
    $region6: #{tpu_custom_call.1} parent=1 // pred_check
      _
    $region7: #{tpu_custom_call.1} parent=1 // pred_check_branch
      %26 = sbr.rel (0) target = $region9
    $region8: #{tpu_custom_call.1} parent=1 // pred_region
      _
    $region9: #{tpu_custom_call.1} parent=1 // pred_fallthru
      _
    // Predicated region
    $region10: #{tpu_custom_call.1} parent=1 // pred_check
      _
    $region11: #{tpu_custom_call.1} parent=1 // pred_check_branch
      %28 = sbr.rel (0) target = $region13
    $region12: #{tpu_custom_call.1} parent=1 // pred_region
      %s30 = ssub.s32 256, 256
      %31 = vsyncadd [#allocation6], %s30
      %s33 = sshll.u32 [#allocation5], 4
      %s34 = int_to_ptr.vmem [resolvable:$true] %s33
      %36 = dma.hbm_to_vmem [thread:$0]  %s2, 256, %s34, [#allocation6]
    $region13: #{tpu_custom_call.1} parent=1 // pred_fallthru
      _
    // Predicated region
    $region14: #{tpu_custom_call.1} parent=1 // pred_check
      _
    $region15: #{tpu_custom_call.1} parent=1 // pred_check_branch
      %38 = sbr.rel (0) target = $region17
    $region16: #{tpu_custom_call.1} parent=1 // pred_region
      %s40 = ssub.s32 2048, 2048
      %41 = vsyncadd [#allocation6], %s40
      %s42 = sshll.u32 [#allocation7], 4
      %s43 = int_to_ptr.vmem [resolvable:$true] %s42
      %48 = dma.hbm_to_vmem [thread:$0]  %s3, 2048, %s43, [#allocation6], 512, 512, 32
    $region17: #{tpu_custom_call.1} parent=1 // pred_fallthru
      _
    // Predicated region
    $region18: #{tpu_custom_call.1} parent=1 // pred_check
      _
    $region19: #{tpu_custom_call.1} parent=1 // pred_check_branch
      %50 = sbr.rel (0) target = $region21
    $region20: #{tpu_custom_call.1} parent=1 // pred_region
      %s52 = ssub.s32 8704, 8704
      %53 = vsyncadd [#allocation9], %s52
      %s54 = sshll.u32 [#allocation8], 4
      %s55 = int_to_ptr.vmem [resolvable:$true] %s54
      %60 = dma.hbm_to_vmem [thread:$0]  %s4, 8704, %s55, [#allocation9], 512, 512, 32
    $region21: #{tpu_custom_call.1} parent=1 // pred_fallthru
      _
    // Predicated region
    $region22: #{tpu_custom_call.1} parent=1 // pred_check
      _
    $region23: #{tpu_custom_call.1} parent=1 // pred_check_branch
      %62 = sbr.rel (0) target = $region25
    $region24: #{tpu_custom_call.1} parent=1 // pred_region
      _
    $region25: #{tpu_custom_call.1} parent=1 // pred_fallthru
      _
    // Predicated region
    $region26: #{tpu_custom_call.1} parent=1 // pred_check
      _
    $region27: #{tpu_custom_call.1} parent=1 // pred_check_branch
      %64 = sbr.rel (0) target = $region29
    $region28: #{tpu_custom_call.1} parent=1 // pred_region
      %65 = dma.done [#allocation3], 32
    $region29: #{tpu_custom_call.1} parent=1 // pred_fallthru
      _
    // Predicated region
    $region30: #{tpu_custom_call.1} parent=1 // pred_check
      _
    $region31: #{tpu_custom_call.1} parent=1 // pred_check_branch
      %67 = sbr.rel (0) target = $region33
    $region32: #{tpu_custom_call.1} parent=1 // pred_region
      %68 = dma.done [#allocation6], 256
    $region33: #{tpu_custom_call.1} parent=1 // pred_fallthru
      _
    // Predicated region
    $region34: #{tpu_custom_call.1} parent=1 // pred_check
      _
    $region35: #{tpu_custom_call.1} parent=1 // pred_check_branch
      %70 = sbr.rel (0) target = $region37
    $region36: #{tpu_custom_call.1} parent=1 // pred_region
      %71 = dma.done [#allocation6], 2048
    $region37: #{tpu_custom_call.1} parent=1 // pred_fallthru
      _
    // Predicated region
    $region38: #{tpu_custom_call.1} parent=1 // pred_check
      _
    $region39: #{tpu_custom_call.1} parent=1 // pred_check_branch
      %73 = sbr.rel (0) target = $region41
    $region40: #{tpu_custom_call.1} parent=1 // pred_region
      %74 = dma.done [#allocation9], 8704
    $region41: #{tpu_custom_call.1} parent=1 // pred_fallthru
      _
    %v75 = vld [vmem:[%s1] sm:$0x3]
    %v76 = vld [vmem:[#allocation5] sm:$0xff]
    %v77 = vld [vmem:[#allocation5 + $0x8] sm:$0xff]
    %vm78 = vcmask 64512
    %v80 = vsel %vm78, %v75, 0
    %82 = vmatprep.subr.mxu0 %v77
    %83 = vmatpush1.msra.mxu0 %v76
    %84 = vmatprep.subr.mxu0 0.0
    %85 = vmatpush1.msra.mxu0 0.0
    %86 = vmatprep.subr.mxu0 0.0
    %87 = vmatpush1.msra.mxu0 0.0
    %88 = vmatprep.subr.mxu0 0.0
    %89 = vmatpush1.msra.mxu0 0.0
    %90 = vmatprep.subr.mxu0 0.0
    %91 = vmatpush1.msra.mxu0 0.0
    %92 = vmatprep.subr.mxu0 0.0
    %93 = vmatpush1.msra.mxu0 0.0
    %94 = vmatprep.subr.mxu0 0.0
    %95 = vmatpush1.msra.mxu0 0.0
    %96 = vmatprep.subr.mxu0 0.0
    %97 = vmatpush1.msra.mxu0 0.0
    %98 = vmatprep.subr.mxu0 0.0
    %99 = vmatpush1.msra.mxu0 0.0
    %100 = vmatprep.subr.mxu0 0.0
    %101 = vmatpush1.msra.mxu0 0.0
    %102 = vmatprep.subr.mxu0 0.0
    %103 = vmatpush1.msra.mxu0 0.0
    %104 = vmatprep.subr.mxu0 0.0
    %105 = vmatpush1.msra.mxu0 0.0
    %106 = vmatprep.subr.mxu0 0.0
    %107 = vmatpush1.msra.mxu0 0.0
    %108 = vmatprep.subr.mxu0 0.0
    %109 = vmatpush1.msra.mxu0 0.0
    %110 = vmatprep.subr.mxu0 0.0
    %111 = vmatpush1.msra.mxu0 0.0
    %112 = vmatprep.subr.mxu0 0.0
    %113 = vmatpush1.msra.mxu0 0.0
    %114 = vmatprep.subr.mxu0 0.0
    %115 = vmatpush1.msra.mxu0 0.0
    %116 = vmatprep.subr.mxu0 0.0
    %117 = vmatpush1.msra.mxu0 0.0
    %118 = vmatprep.subr.mxu0 0.0
    %119 = vmatpush1.msra.mxu0 0.0
    %120 = vmatprep.subr.mxu0 0.0
    %121 = vmatpush1.msra.mxu0 0.0
    %122 = vmatprep.subr.mxu0 0.0
    %123 = vmatpush1.msra.mxu0 0.0
    %124 = vmatprep.subr.mxu0 0.0
    %125 = vmatpush1.msra.mxu0 0.0
    %126 = vmatprep.subr.mxu0 0.0
    %127 = vmatpush1.msra.mxu0 0.0
    %128 = vmatprep.subr.mxu0 0.0
    %129 = vmatpush1.msra.mxu0 0.0
    %130 = vmatprep.subr.mxu0 0.0
    %131 = vmatpush1.msra.mxu0 0.0
    %132 = vmatprep.subr.mxu0 0.0
    %133 = vmatpush1.msra.mxu0 0.0
    %134 = vmatprep.subr.mxu0 0.0
    %135 = vmatpush1.msra.mxu0 0.0
    %136 = vmatprep.subr.mxu0 0.0
    %137 = vmatpush1.msra.mxu0 0.0
    %138 = vmatprep.subr.mxu0 0.0
    %139 = vmatpush1.msra.mxu0 0.0
    %140 = vmatprep.subr.mxu0 0.0
    %141 = vmatpush1.msra.mxu0 0.0
    %142 = vmatprep.subr.mxu0 0.0
    %143 = vmatpush1.msra.mxu0 0.0
    %144 = vmatprep.subr.mxu0 0.0
    %145 = vmatpush1.msra.mxu0 0.0
    %146 = vmatprep.mubr.f32.mxu0 0.0
    %147 = vmatmul.mubr.f32.gmra.mrb[0].mxu0 %v80
    %v148 = vpop.f32.mrb[0].mxu0
    %v149 = vadd.f32 0.0, %v148
    %v150 = vpop.f32.mrb[0].mxu0
    %v151 = vadd.f32 0.0, %v150
    %152 = vdwg.mxu0
    %v153 = vlaneseq
    %v154 = vand.u32 %v153, 127
    %v155 = vadd.s32 %v154, 128
    %v156 = vcvt.s32.f32 %v154
    %v157 = vcvt.s32.f32 %v155
    %vm158 = vcmp.eq.f32.partialorder %v156, %v149
    %vm159 = vcmp.eq.f32.partialorder %v157, %v151
    %v160 = vsel %vm158, 1, 0
    %v161 = vsel %vm159, 1, 0
    %v162 = vcvt.s32.f32 %v160
    %v163 = vcvt.s32.f32 %v161
    %v164 = vld [vmem:[#allocation2] sm:$0x3]
    %v165 = vld [vmem:[#allocation7] sm:$0xff]
    %v166 = vld [vmem:[#allocation7 + $0x8] sm:$0xff]
    %v167 = vld [vmem:[#allocation7 + $0x10] sm:$0xff]
    %v168 = vld [vmem:[#allocation7 + $0x18] sm:$0xff]
    %v169 = vld [vmem:[#allocation7 + $0x20] sm:$0xff]
    %v170 = vld [vmem:[#allocation7 + $0x28] sm:$0xff]
    %v171 = vld [vmem:[#allocation7 + $0x30] sm:$0xff]
    %v172 = vld [vmem:[#allocation7 + $0x38] sm:$0xff]
    %v173 = vld [vmem:[#allocation7 + $0x40] sm:$0xff]
    %v174 = vld [vmem:[#allocation7 + $0x48] sm:$0xff]
    %v175 = vld [vmem:[#allocation7 + $0x50] sm:$0xff]
    %v176 = vld [vmem:[#allocation7 + $0x58] sm:$0xff]
    %v177 = vld [vmem:[#allocation7 + $0x60] sm:$0xff]
    %v178 = vld [vmem:[#allocation7 + $0x68] sm:$0xff]
    %v179 = vld [vmem:[#allocation7 + $0x70] sm:$0xff]
    %v180 = vld [vmem:[#allocation7 + $0x78] sm:$0xff]
    %v181 = vld [vmem:[#allocation8] sm:$0xff]
    %v182 = vld [vmem:[#allocation8 + $0x8] sm:$0xff]
    %v183 = vld [vmem:[#allocation8 + $0x10] sm:$0xff]
    %v184 = vld [vmem:[#allocation8 + $0x18] sm:$0xff]
    %v185 = vld [vmem:[#allocation8 + $0x20] sm:$0xff]
    %v186 = vld [vmem:[#allocation8 + $0x28] sm:$0xff]
    %v187 = vld [vmem:[#allocation8 + $0x30] sm:$0xff]
    %v188 = vld [vmem:[#allocation8 + $0x38] sm:$0xff]
    %v189 = vld [vmem:[#allocation8 + $0x40] sm:$0xff]
    %v190 = vld [vmem:[#allocation8 + $0x48] sm:$0xff]
    %v191 = vld [vmem:[#allocation8 + $0x50] sm:$0xff]
    %v192 = vld [vmem:[#allocation8 + $0x58] sm:$0xff]
    %v193 = vld [vmem:[#allocation8 + $0x60] sm:$0xff]
    %v194 = vld [vmem:[#allocation8 + $0x68] sm:$0xff]
    %v195 = vld [vmem:[#allocation8 + $0x70] sm:$0xff]
    %v196 = vld [vmem:[#allocation8 + $0x78] sm:$0xff]
    %v197 = vld [vmem:[#allocation8 + $0x80] sm:$0xff]
    %v198 = vld [vmem:[#allocation8 + $0x88] sm:$0xff]
    %v199 = vld [vmem:[#allocation8 + $0x90] sm:$0xff]
    %v200 = vld [vmem:[#allocation8 + $0x98] sm:$0xff]
    %v201 = vld [vmem:[#allocation8 + $0xa0] sm:$0xff]
    %v202 = vld [vmem:[#allocation8 + $0xa8] sm:$0xff]
    %v203 = vld [vmem:[#allocation8 + $0xb0] sm:$0xff]
    %v204 = vld [vmem:[#allocation8 + $0xb8] sm:$0xff]
    %v205 = vld [vmem:[#allocation8 + $0xc0] sm:$0xff]
    %v206 = vld [vmem:[#allocation8 + $0xc8] sm:$0xff]
    %v207 = vld [vmem:[#allocation8 + $0xd0] sm:$0xff]
    %v208 = vld [vmem:[#allocation8 + $0xd8] sm:$0xff]
    %v209 = vld [vmem:[#allocation8 + $0xe0] sm:$0xff]
    %v210 = vld [vmem:[#allocation8 + $0xe8] sm:$0xff]
    %v211 = vld [vmem:[#allocation8 + $0xf0] sm:$0xff]
    %v212 = vld [vmem:[#allocation8 + $0xf8] sm:$0xff]
    %v213 = vld [vmem:[#allocation8 + $0x100] sm:$0xff]
    %v214 = vld [vmem:[#allocation8 + $0x108] sm:$0xff]
    %v215 = vld [vmem:[#allocation8 + $0x110] sm:$0xff]
    %v216 = vld [vmem:[#allocation8 + $0x118] sm:$0xff]
    %v217 = vld [vmem:[#allocation8 + $0x120] sm:$0xff]
    %v218 = vld [vmem:[#allocation8 + $0x128] sm:$0xff]
    %v219 = vld [vmem:[#allocation8 + $0x130] sm:$0xff]
    %v220 = vld [vmem:[#allocation8 + $0x138] sm:$0xff]
    %v221 = vld [vmem:[#allocation8 + $0x140] sm:$0xff]
    %v222 = vld [vmem:[#allocation8 + $0x148] sm:$0xff]
    %v223 = vld [vmem:[#allocation8 + $0x150] sm:$0xff]
    %v224 = vld [vmem:[#allocation8 + $0x158] sm:$0xff]
    %v225 = vld [vmem:[#allocation8 + $0x160] sm:$0xff]
    %v226 = vld [vmem:[#allocation8 + $0x168] sm:$0xff]
    %v227 = vld [vmem:[#allocation8 + $0x170] sm:$0xff]
    %v228 = vld [vmem:[#allocation8 + $0x178] sm:$0xff]
    %v229 = vld [vmem:[#allocation8 + $0x180] sm:$0xff]
    %v230 = vld [vmem:[#allocation8 + $0x188] sm:$0xff]
    %v231 = vld [vmem:[#allocation8 + $0x190] sm:$0xff]
    %v232 = vld [vmem:[#allocation8 + $0x198] sm:$0xff]
    %v233 = vld [vmem:[#allocation8 + $0x1a0] sm:$0xff]
    %v234 = vld [vmem:[#allocation8 + $0x1a8] sm:$0xff]
    %v235 = vld [vmem:[#allocation8 + $0x1b0] sm:$0xff]
    %v236 = vld [vmem:[#allocation8 + $0x1b8] sm:$0xff]
    %v237 = vld [vmem:[#allocation8 + $0x1c0] sm:$0xff]
    %v238 = vld [vmem:[#allocation8 + $0x1c8] sm:$0xff]
    %v239 = vld [vmem:[#allocation8 + $0x1d0] sm:$0xff]
    %v240 = vld [vmem:[#allocation8 + $0x1d8] sm:$0xff]
    %v241 = vld [vmem:[#allocation8 + $0x1e0] sm:$0xff]
    %v242 = vld [vmem:[#allocation8 + $0x1e8] sm:$0xff]
    %v243 = vld [vmem:[#allocation8 + $0x1f0] sm:$0xff]
    %v244 = vld [vmem:[#allocation8 + $0x1f8] sm:$0xff]
    %v245 = vld [vmem:[#allocation8 + $0x200] sm:$0xff]
    %v246 = vld [vmem:[#allocation8 + $0x208] sm:$0xff]
    %v247 = vld [vmem:[#allocation8 + $0x210] sm:$0xff]
    %v248 = vld [vmem:[#allocation8 + $0x218] sm:$0xff]
    %v250 = vsel %vm78, %v163, 0
    %252 = vmatprep.subr.mxu0 %v182
    %253 = vmatpush1.msra.mxu0 %v181
    %254 = vmatprep.subr.mxu0 %v186
    %255 = vmatpush1.msra.mxu0 %v185
    %256 = vmatprep.subr.mxu0 %v190
    %257 = vmatpush1.msra.mxu0 %v189
    %258 = vmatprep.subr.mxu0 %v194
    %259 = vmatpush1.msra.mxu0 %v193
    %260 = vmatprep.subr.mxu0 %v198
    %261 = vmatpush1.msra.mxu0 %v197
    %262 = vmatprep.subr.mxu0 %v202
    %263 = vmatpush1.msra.mxu0 %v201
    %264 = vmatprep.subr.mxu0 %v206
    %265 = vmatpush1.msra.mxu0 %v205
    %266 = vmatprep.subr.mxu0 %v210
    %267 = vmatpush1.msra.mxu0 %v209
    %268 = vmatprep.subr.mxu0 %v214
    %269 = vmatpush1.msra.mxu0 %v213
    %270 = vmatprep.subr.mxu0 %v218
    %271 = vmatpush1.msra.mxu0 %v217
    %272 = vmatprep.subr.mxu0 %v222
    %273 = vmatpush1.msra.mxu0 %v221
    %274 = vmatprep.subr.mxu0 %v226
    %275 = vmatpush1.msra.mxu0 %v225
    %276 = vmatprep.subr.mxu0 %v230
    %277 = vmatpush1.msra.mxu0 %v229
    %278 = vmatprep.subr.mxu0 %v234
    %279 = vmatpush1.msra.mxu0 %v233
    %280 = vmatprep.subr.mxu0 %v238
    %281 = vmatpush1.msra.mxu0 %v237
    %282 = vmatprep.subr.mxu0 %v242
    %283 = vmatpush1.msra.mxu0 %v241
    %284 = vmatprep.subr.mxu0 %v246
    %285 = vmatpush1.msra.mxu0 %v245
    %286 = vmatprep.subr.mxu0 0.0
    %287 = vmatpush1.msra.mxu0 0.0
    %288 = vmatprep.subr.mxu0 0.0
    %289 = vmatpush1.msra.mxu0 0.0
    %290 = vmatprep.subr.mxu0 0.0
    %291 = vmatpush1.msra.mxu0 0.0
    %292 = vmatprep.subr.mxu0 0.0
    %293 = vmatpush1.msra.mxu0 0.0
    %294 = vmatprep.subr.mxu0 0.0
    %295 = vmatpush1.msra.mxu0 0.0
    %296 = vmatprep.subr.mxu0 0.0
    %297 = vmatpush1.msra.mxu0 0.0
    %298 = vmatprep.subr.mxu0 0.0
    %299 = vmatpush1.msra.mxu0 0.0
    %300 = vmatprep.subr.mxu0 0.0
    %301 = vmatpush1.msra.mxu0 0.0
    %302 = vmatprep.subr.mxu0 0.0
    %303 = vmatpush1.msra.mxu0 0.0
    %304 = vmatprep.subr.mxu0 0.0
    %305 = vmatpush1.msra.mxu0 0.0
    %306 = vmatprep.subr.mxu0 0.0
    %307 = vmatpush1.msra.mxu0 0.0
    %308 = vmatprep.subr.mxu0 0.0
    %309 = vmatpush1.msra.mxu0 0.0
    %310 = vmatprep.subr.mxu0 0.0
    %311 = vmatpush1.msra.mxu0 0.0
    %312 = vmatprep.subr.mxu0 0.0
    %313 = vmatpush1.msra.mxu0 0.0
    %314 = vmatprep.subr.mxu0 0.0
    %315 = vmatpush1.msra.mxu0 0.0
    %316 = vmatprep.mubr.f32.mxu0 %v250
    %317 = vmatmul.mubr.f32.gmra.mrb[0].mxu0 %v162
    %v318 = vpop.f32.mrb[0].mxu0
    %v319 = vadd.f32 0.0, %v318
    %v320 = vpop.f32.mrb[0].mxu0
    %v321 = vadd.f32 0.0, %v320
    %322 = vdwg.mxu0
    %323 = vmatprep.subr.mxu0 %v184
    %324 = vmatpush1.msra.mxu0 %v183
    %325 = vmatprep.subr.mxu0 %v188
    %326 = vmatpush1.msra.mxu0 %v187
    %327 = vmatprep.subr.mxu0 %v192
    %328 = vmatpush1.msra.mxu0 %v191
    %329 = vmatprep.subr.mxu0 %v196
    %330 = vmatpush1.msra.mxu0 %v195
    %331 = vmatprep.subr.mxu0 %v200
    %332 = vmatpush1.msra.mxu0 %v199
    %333 = vmatprep.subr.mxu0 %v204
    %334 = vmatpush1.msra.mxu0 %v203
    %335 = vmatprep.subr.mxu0 %v208
    %336 = vmatpush1.msra.mxu0 %v207
    %337 = vmatprep.subr.mxu0 %v212
    %338 = vmatpush1.msra.mxu0 %v211
    %339 = vmatprep.subr.mxu0 %v216
    %340 = vmatpush1.msra.mxu0 %v215
    %341 = vmatprep.subr.mxu0 %v220
    %342 = vmatpush1.msra.mxu0 %v219
    %343 = vmatprep.subr.mxu0 %v224
    %344 = vmatpush1.msra.mxu0 %v223
    %345 = vmatprep.subr.mxu0 %v228
    %346 = vmatpush1.msra.mxu0 %v227
    %347 = vmatprep.subr.mxu0 %v232
    %348 = vmatpush1.msra.mxu0 %v231
    %349 = vmatprep.subr.mxu0 %v236
    %350 = vmatpush1.msra.mxu0 %v235
    %351 = vmatprep.subr.mxu0 %v240
    %352 = vmatpush1.msra.mxu0 %v239
    %353 = vmatprep.subr.mxu0 %v244
    %354 = vmatpush1.msra.mxu0 %v243
    %355 = vmatprep.subr.mxu0 %v248
    %356 = vmatpush1.msra.mxu0 %v247
    %357 = vmatprep.subr.mxu0 0.0
    %358 = vmatpush1.msra.mxu0 0.0
    %359 = vmatprep.subr.mxu0 0.0
    %360 = vmatpush1.msra.mxu0 0.0
    %361 = vmatprep.subr.mxu0 0.0
    %362 = vmatpush1.msra.mxu0 0.0
    %363 = vmatprep.subr.mxu0 0.0
    %364 = vmatpush1.msra.mxu0 0.0
    %365 = vmatprep.subr.mxu0 0.0
    %366 = vmatpush1.msra.mxu0 0.0
    %367 = vmatprep.subr.mxu0 0.0
    %368 = vmatpush1.msra.mxu0 0.0
    %369 = vmatprep.subr.mxu0 0.0
    %370 = vmatpush1.msra.mxu0 0.0
    %371 = vmatprep.subr.mxu0 0.0
    %372 = vmatpush1.msra.mxu0 0.0
    %373 = vmatprep.subr.mxu0 0.0
    %374 = vmatpush1.msra.mxu0 0.0
    %375 = vmatprep.subr.mxu0 0.0
    %376 = vmatpush1.msra.mxu0 0.0
    %377 = vmatprep.subr.mxu0 0.0
    %378 = vmatpush1.msra.mxu0 0.0
    %379 = vmatprep.subr.mxu0 0.0
    %380 = vmatpush1.msra.mxu0 0.0
    %381 = vmatprep.subr.mxu0 0.0
    %382 = vmatpush1.msra.mxu0 0.0
    %383 = vmatprep.subr.mxu0 0.0
    %384 = vmatpush1.msra.mxu0 0.0
    %385 = vmatprep.subr.mxu0 0.0
    %386 = vmatpush1.msra.mxu0 0.0
    %387 = vmatprep.mubr.f32.mxu0 %v250
    %388 = vmatmul.mubr.f32.gmra.mrb[0].mxu0 %v162
    %v389 = vpop.f32.mrb[0].mxu0
    %v390 = vadd.f32 0.0, %v389
    %v391 = vpop.f32.mrb[0].mxu0
    %v392 = vadd.f32 0.0, %v391
    %393 = vdwg.mxu0
    %vm394 = vcmask 261120
    %v396 = vsel %vm394, %v164, 0
    %398 = vmatprep.subr.mxu0 %v166
    %399 = vmatpush1.msra.mxu0 %v165
    %400 = vmatprep.subr.mxu0 %v170
    %401 = vmatpush1.msra.mxu0 %v169
    %402 = vmatprep.subr.mxu0 %v174
    %403 = vmatpush1.msra.mxu0 %v173
    %404 = vmatprep.subr.mxu0 %v178
    %405 = vmatpush1.msra.mxu0 %v177
    %406 = vmatprep.subr.mxu0 0.0
    %407 = vmatpush1.msra.mxu0 0.0
    %408 = vmatprep.subr.mxu0 0.0
    %409 = vmatpush1.msra.mxu0 0.0
    %410 = vmatprep.subr.mxu0 0.0
    %411 = vmatpush1.msra.mxu0 0.0
    %412 = vmatprep.subr.mxu0 0.0
    %413 = vmatpush1.msra.mxu0 0.0
    %414 = vmatprep.subr.mxu0 0.0
    %415 = vmatpush1.msra.mxu0 0.0
    %416 = vmatprep.subr.mxu0 0.0
    %417 = vmatpush1.msra.mxu0 0.0
    %418 = vmatprep.subr.mxu0 0.0
    %419 = vmatpush1.msra.mxu0 0.0
    %420 = vmatprep.subr.mxu0 0.0
    %421 = vmatpush1.msra.mxu0 0.0
    %422 = vmatprep.subr.mxu0 0.0
    %423 = vmatpush1.msra.mxu0 0.0
    %424 = vmatprep.subr.mxu0 0.0
    %425 = vmatpush1.msra.mxu0 0.0
    %426 = vmatprep.subr.mxu0 0.0
    %427 = vmatpush1.msra.mxu0 0.0
    %428 = vmatprep.subr.mxu0 0.0
    %429 = vmatpush1.msra.mxu0 0.0
    %430 = vmatprep.subr.mxu0 0.0
    %431 = vmatpush1.msra.mxu0 0.0
    %432 = vmatprep.subr.mxu0 0.0
    %433 = vmatpush1.msra.mxu0 0.0
    %434 = vmatprep.subr.mxu0 0.0
    %435 = vmatpush1.msra.mxu0 0.0
    %436 = vmatprep.subr.mxu0 0.0
    %437 = vmatpush1.msra.mxu0 0.0
    %438 = vmatprep.subr.mxu0 0.0
    %439 = vmatpush1.msra.mxu0 0.0
    %440 = vmatprep.subr.mxu0 0.0
    %441 = vmatpush1.msra.mxu0 0.0
    %442 = vmatprep.subr.mxu0 0.0
    %443 = vmatpush1.msra.mxu0 0.0
    %444 = vmatprep.subr.mxu0 0.0
    %445 = vmatpush1.msra.mxu0 0.0
    %446 = vmatprep.subr.mxu0 0.0
    %447 = vmatpush1.msra.mxu0 0.0
    %448 = vmatprep.subr.mxu0 0.0
    %449 = vmatpush1.msra.mxu0 0.0
    %450 = vmatprep.subr.mxu0 0.0
    %451 = vmatpush1.msra.mxu0 0.0
    %452 = vmatprep.subr.mxu0 0.0
    %453 = vmatpush1.msra.mxu0 0.0
    %454 = vmatprep.subr.mxu0 0.0
    %455 = vmatpush1.msra.mxu0 0.0
    %456 = vmatprep.subr.mxu0 0.0
    %457 = vmatpush1.msra.mxu0 0.0
    %458 = vmatprep.subr.mxu0 0.0
    %459 = vmatpush1.msra.mxu0 0.0
    %460 = vmatprep.subr.mxu0 0.0
    %461 = vmatpush1.msra.mxu0 0.0
    %462 = vmatprep.mubr.f32.mxu0 0.0
    %463 = vmatmul.mubr.f32.gmra.mrb[0].mxu0 %v396
    %v464 = vpop.f32.mrb[0].mxu0
    %v465 = vadd.f32 %v319, %v464
    %v466 = vpop.f32.mrb[0].mxu0
    %v467 = vadd.f32 %v321, %v466
    %468 = vdwg.mxu0
    %469 = vmatprep.subr.mxu0 %v168
    %470 = vmatpush1.msra.mxu0 %v167
    %471 = vmatprep.subr.mxu0 %v172
    %472 = vmatpush1.msra.mxu0 %v171
    %473 = vmatprep.subr.mxu0 %v176
    %474 = vmatpush1.msra.mxu0 %v175
    %475 = vmatprep.subr.mxu0 %v180
    %476 = vmatpush1.msra.mxu0 %v179
    %477 = vmatprep.subr.mxu0 0.0
    %478 = vmatpush1.msra.mxu0 0.0
    %479 = vmatprep.subr.mxu0 0.0
    %480 = vmatpush1.msra.mxu0 0.0
    %481 = vmatprep.subr.mxu0 0.0
    %482 = vmatpush1.msra.mxu0 0.0
    %483 = vmatprep.subr.mxu0 0.0
    %484 = vmatpush1.msra.mxu0 0.0
    %485 = vmatprep.subr.mxu0 0.0
    %486 = vmatpush1.msra.mxu0 0.0
    %487 = vmatprep.subr.mxu0 0.0
    %488 = vmatpush1.msra.mxu0 0.0
    %489 = vmatprep.subr.mxu0 0.0
    %490 = vmatpush1.msra.mxu0 0.0
    %491 = vmatprep.subr.mxu0 0.0
    %492 = vmatpush1.msra.mxu0 0.0
    %493 = vmatprep.subr.mxu0 0.0
    %494 = vmatpush1.msra.mxu0 0.0
    %495 = vmatprep.subr.mxu0 0.0
    %496 = vmatpush1.msra.mxu0 0.0
    %497 = vmatprep.subr.mxu0 0.0
    %498 = vmatpush1.msra.mxu0 0.0
    %499 = vmatprep.subr.mxu0 0.0
    %500 = vmatpush1.msra.mxu0 0.0
    %501 = vmatprep.subr.mxu0 0.0
    %502 = vmatpush1.msra.mxu0 0.0
    %503 = vmatprep.subr.mxu0 0.0
    %504 = vmatpush1.msra.mxu0 0.0
    %505 = vmatprep.subr.mxu0 0.0
    %506 = vmatpush1.msra.mxu0 0.0
    %507 = vmatprep.subr.mxu0 0.0
    %508 = vmatpush1.msra.mxu0 0.0
    %509 = vmatprep.subr.mxu0 0.0
    %510 = vmatpush1.msra.mxu0 0.0
    %511 = vmatprep.subr.mxu0 0.0
    %512 = vmatpush1.msra.mxu0 0.0
    %513 = vmatprep.subr.mxu0 0.0
    %514 = vmatpush1.msra.mxu0 0.0
    %515 = vmatprep.subr.mxu0 0.0
    %516 = vmatpush1.msra.mxu0 0.0
    %517 = vmatprep.subr.mxu0 0.0
    %518 = vmatpush1.msra.mxu0 0.0
    %519 = vmatprep.subr.mxu0 0.0
    %520 = vmatpush1.msra.mxu0 0.0
    %521 = vmatprep.subr.mxu0 0.0
    %522 = vmatpush1.msra.mxu0 0.0
    %523 = vmatprep.subr.mxu0 0.0
    %524 = vmatpush1.msra.mxu0 0.0
    %525 = vmatprep.subr.mxu0 0.0
    %526 = vmatpush1.msra.mxu0 0.0
    %527 = vmatprep.subr.mxu0 0.0
    %528 = vmatpush1.msra.mxu0 0.0
    %529 = vmatprep.subr.mxu0 0.0
    %530 = vmatpush1.msra.mxu0 0.0
    %531 = vmatprep.subr.mxu0 0.0
    %532 = vmatpush1.msra.mxu0 0.0
    %533 = vmatprep.mubr.f32.mxu0 0.0
    %534 = vmatmul.mubr.f32.gmra.mrb[0].mxu0 %v396
    %v535 = vpop.f32.mrb[0].mxu0
    %v536 = vadd.f32 %v390, %v535
    %v537 = vpop.f32.mrb[0].mxu0
    %v538 = vadd.f32 %v392, %v537
    %539 = vdwg.mxu0
    %v540 = vld [vmem:[%s5] sm:$0xf]
    %v542 = vlaneseq
    %v543 = vshrl.u32 %v542, 7
    %v544 = vsub.s32 0, %v543
    %v545 = vrot.slane %v540, %v544
    %v546 = vlaneseq
    %v547 = vshrl.u32 %v546, 7
    %v548 = vsub.s32 1, %v547
    %v549 = vrot.slane %v540, %v548
    %v550 = vlaneseq
    %v551 = vshrl.u32 %v550, 7
    %v552 = vsub.s32 2, %v551
    %v553 = vrot.slane %v540, %v552
    %v554 = vlaneseq
    %v555 = vshrl.u32 %v554, 7
    %v556 = vsub.s32 3, %v555
    %v557 = vrot.slane %v540, %v556
    %v562 = vadd.f32 %v465, %v545
    %v563 = vadd.f32 %v467, %v549
    %v564 = vadd.f32 %v536, %v553
    %v565 = vadd.f32 %v538, %v557
    %v570 = vcombine.low %v562, %v563
    %v571 = vcombine.low %v564, %v565
    %v573 = vunpack.c.l.s4 1983009808
    %v574 = vunpack.c.0.s8 %v573
    %v575 = vlaneseq
    %v576 = vshrl.u32 %v575, 7
    %v577 = vsub.s32 %v574, %v576
    %v578 = vrot.slane %v570, %v577
    %v580 = vunpack.c.l.s4 1983009808
    %v581 = vunpack.c.0.s8 %v580
    %v582 = vlaneseq
    %v583 = vshrl.u32 %v582, 7
    %v584 = vsub.s32 %v581, %v583
    %v585 = vrot.slane %v571, %v584
    %v586 = vcombine.low %v578, %v585
    %588 = vst [vmem:[#allocation10] sm:$0xff] %v586
    // Predicated region
    $region42: #{tpu_custom_call.1} parent=1 // pred_check
      _
    $region43: #{tpu_custom_call.1} parent=1 // pred_check_branch
      %590 = sbr.rel (0) target = $region45
    $region44: #{tpu_custom_call.1} parent=1 // pred_region
      %s592 = ssub.s32 128, 128
      %593 = vsyncadd [#allocation4], %s592
      %s595 = sshll.u32 [#allocation10], 4
      %s596 = int_to_ptr.vmem [resolvable:$true] %s595
      %598 = dma.vmem_to_hbm [thread:$0]  %s596, 128, %s6, [#allocation4]
    $region45: #{tpu_custom_call.1} parent=1 // pred_fallthru
      _
    // Predicated region
    $region46: #{tpu_custom_call.1} parent=1 // pred_check
      _
    $region47: #{tpu_custom_call.1} parent=1 // pred_check_branch
      %600 = sbr.rel (0) target = $region49
    $region48: #{tpu_custom_call.1} parent=1 // pred_region
      %601 = dma.done [#allocation4], 128
    $region49: #{tpu_custom_call.1} parent=1 // pred_fallthru
      _
    %602 = vsyncpa [#allocation3], 1
    %603 = vsyncpa [#allocation6], 1
    %604 = vsyncpa [#allocation9], 1
    %605 = vsyncpa [#allocation4], 1

</llo_original>
